<compile_context>
chip_gen: v5e
topology: v5e:2x2
jax: 0.10.0
libtpu: 0.0.40
codegen_flags: <defaults>
</compile_context>

<pallas_src>
import functools

import jax
import jax.numpy as jnp
from jax import lax
from jax.experimental import pallas as pl
from jax.experimental.pallas import tpu as pltpu


def _grad_matching_kernel(
    w_ref,        # (N,) f32 in SMEM: gamma ** (N - 1 - i)
    gt_ref,       # (BT, L)      input dtype (resident across the N axis)
    pred_ref,     # (1, BT, L)   input dtype, one prediction per grid step
    loss_ref,     # (1, BT, 128) f32: per-row weighted UN-normalized sums
    nv_ref,       # (1, BT, 128) f32: per-row num_valid (written once)
    gt_s,         # (BT, L) scratch (input-ish dtype): clipped gt
    mu_s,         # (BT, L) bf16 scratch: horizontal pair mask (w-1, w)
    mv_s,         # (BT, L) bf16 scratch: vertical   pair mask (h-1, h)
    *, max_depth, t_valid, w_dim, hw_dim):
    n = pl.program_id(1)

    # --- gt-only work, hoisted: runs once per batch tile (first pred only) ---
    @pl.when(n == 0)
    def _init():
        loss_ref[...] = jnp.zeros_like(loss_ref)
        gt = jnp.clip(gt_ref[...].astype(jnp.float32), 0.0, max_depth)
        gt_s[...] = gt.astype(gt_s.dtype)
        mask = (gt > t_valid).astype(jnp.float32)
        lane = lax.broadcasted_iota(jnp.int32, mask.shape, dimension=1)
        # pair (j-1, j) along W: invalid when j is the first column of a row
        # (roll wrap-around) -> matches reference pairs (w, w+1).
        bnd_u = (lane % w_dim != 0).astype(jnp.float32)
        # pair (j-W, j) along H: invalid when j is in the first row of an
        # image (wrap / crossing C or B boundaries).
        bnd_v = (lane % hw_dim >= w_dim).astype(jnp.float32)
        mu = mask * pltpu.roll(mask, 1, axis=1) * bnd_u
        mv = mask * pltpu.roll(mask, w_dim, axis=1) * bnd_v
        mu_s[...] = mu.astype(mu_s.dtype)       # exactly 0/1 -> bf16 lossless
        mv_s[...] = mv.astype(mv_s.dtype)
        num_valid = jnp.sum(mu + mv, axis=-1, keepdims=True)        # (BT, 1)
        nv_ref[...] = jnp.broadcast_to(num_valid, nv_ref.shape)

    # --- per-prediction work (f32 math regardless of storage dtype) ---
    pred = jnp.clip(pred_ref[0].astype(jnp.float32), 0.0, max_depth)
    residual = pred - gt_s[...].astype(jnp.float32)
    grad_u = jnp.abs(residual - pltpu.roll(residual, 1, axis=1))
    grad_v = jnp.abs(residual - pltpu.roll(residual, w_dim, axis=1))
    lu = mu_s[...].astype(jnp.float32) * grad_u
    lv = mv_s[...].astype(jnp.float32) * grad_v
    # NaN-only cleanup.  nan_to_num equivalence holds because pred/gt are
    # clipped above, so +-inf is unreachable; only NaN inputs propagate.
    loss = jnp.where(lu != lu, 0.0, lu) + jnp.where(lv != lv, 0.0, lv)
    per_b = jnp.sum(loss, axis=-1, keepdims=True)                    # (BT, 1)
    # Per-row, lane-broadcast accumulation (no cross-sublane reduce).
    loss_ref[...] += w_ref[n] * per_b


def _vmem_capacity_bytes():
    """Physical VMEM of the current chip; conservative fallback (v7x)."""
    try:
        return int(pltpu.get_tpu_info().vmem_capacity_bytes)
    except Exception:
        return 64 * 1024 * 1024


def _pick_b_tile(b, per_row_bytes, vmem_budget_bytes, min_batch_tiles=1):
    """Rows per batch tile.

    A single tile (b_tile == B) may have any row count; when B is split,
    b_tile must be a multiple of 8 (sublane tiling rule).  Prefer divisors of
    B so the stacked predictions never need a pad copy (only gt, which is
    cheap, is ever padded).  `min_batch_tiles > 1` lets v7x callers force
    both TensorCores to get work on the "parallel" batch-tile axis.
    """
    if b <= 8:
        return b
    max_rows = max(8, int(vmem_budget_bytes // max(per_row_bytes, 1)))
    want_split = min_batch_tiles > 1 and b >= 8 * min_batch_tiles
    if b <= max_rows and not want_split:
        return b
    limit = min(b, max_rows)
    if want_split:
        limit = min(limit, max(8, (b // min_batch_tiles) // 8 * 8))
    limit = max(8, (limit // 8) * 8)
    for cand in range(limit, 7, -8):
        if b % cand == 0:
            return cand            # divisor of B: no padding anywhere
    return limit                   # pad gt only; pred edge rows are masked out


def grad_matching_loss(seq_pred, gt, *, max_depth, gamma, t_valid=1e-4,
                       min_batch_tiles=1):
    """Pallas implementation of GradMatchingLoss.forward.

    seq_pred: list/tuple of (B, C, H, W) arrays, or a pre-stacked
              (N, B, C, H, W) array (avoids the stack copy).
    gt:       (B, C, H, W) array.
    Inputs may be float32 or bfloat16 (in-kernel math is float32; bf16 HBM
    storage halves DMA traffic and is recommended on v5e).
    min_batch_tiles: set to 2 on v7x so both TensorCores get parallel work.
    Returns a float32 scalar.
    """
    if isinstance(seq_pred, (list, tuple)):
        preds = jnp.stack(seq_pred, axis=0)        # (N, B, C, H, W)
    else:
        preds = seq_pred
    n_pred, b, c, h, w = preds.shape
    assert gt.shape == (b, c, h, w)
    l = c * h * w

    # Free reshapes: fold C,H,W onto the lane axis (lane-dense layout).
    preds2 = preds.reshape(n_pred, b, l)
    gt2 = jnp.reshape(gt, (b, l))

    pred_item = jnp.dtype(preds2.dtype).itemsize
    gt_item = jnp.dtype(gt2.dtype).itemsize
    gt_store_dtype = jnp.bfloat16 if gt2.dtype == jnp.bfloat16 else jnp.float32
    scratch_item = jnp.dtype(gt_store_dtype).itemsize + 2 + 2   # gt_s + 2x bf16 masks
    # Resident bytes per batch row: double-buffered pred + gt windows,
    # persistent scratch, two small lane-dense outputs.
    per_row_bytes = l * (2 * pred_item + 2 * gt_item + scratch_item) + 4 * 128 * 4

    vmem_cap = _vmem_capacity_bytes()
    b_tile = _pick_b_tile(b, per_row_bytes, int(0.7 * vmem_cap), min_batch_tiles)
    num_bt = pl.cdiv(b, b_tile)

    # Only gt is ever padded (B*L, cheap).  Padded gt rows are zero, so their
    # masks and num_valid are zero and they contribute exactly
    # 0 / (0 + 1e-8) = 0 to the final sum.  The predictions are NOT padded:
    # any garbage rows in an edge block are killed by the zero masks (and the
    # NaN-only where), so no O(N*B*L) pad copy is needed.
    b_full = num_bt * b_tile
    if b_full != b:
        gt2 = jnp.pad(gt2, ((0, b_full - b), (0, 0)))

    footprint = b_tile * per_row_bytes
    vmem_limit = int(min(0.875 * vmem_cap,
                         max(1.25 * footprint + (2 << 20), 32 << 20)))

    weights = (gamma ** jnp.arange(n_pred - 1, -1, -1, dtype=jnp.float32)
               ).astype(jnp.float32)

    kernel = functools.partial(
        _grad_matching_kernel,
        max_depth=float(max_depth), t_valid=float(t_valid),
        w_dim=w, hw_dim=h * w)

    loss_sums, num_valid = pl.pallas_call(
        kernel,
        out_shape=(
            jax.ShapeDtypeStruct((num_bt, b_tile, 128), jnp.float32),
            jax.ShapeDtypeStruct((num_bt, b_tile, 128), jnp.float32),
        ),
        grid=(num_bt, n_pred),
        in_specs=[
            # per-prediction weights: small vector in SMEM
            pl.BlockSpec(memory_space=pltpu.MemorySpace.SMEM),
            # gt: one batch tile, resident across the N axis
            pl.BlockSpec((b_tile, l), lambda bt, i: (bt, 0)),
            # predictions: one sequence element + batch tile per grid step
            pl.BlockSpec((1, b_tile, l), lambda bt, i: (i, bt, 0)),
        ],
        out_specs=[
            pl.BlockSpec((1, b_tile, 128), lambda bt, i: (bt, 0, 0)),
            pl.BlockSpec((1, b_tile, 128), lambda bt, i: (bt, 0, 0)),
        ],
        scratch_shapes=[
            pltpu.VMEM((b_tile, l), gt_store_dtype),   # clipped gt
            pltpu.VMEM((b_tile, l), jnp.bfloat16),     # mask_u (0/1)
            pltpu.VMEM((b_tile, l), jnp.bfloat16),     # mask_v (0/1)
        ],
        compiler_params=pltpu.CompilerParams(
            dimension_semantics=("parallel", "arbitrary"),
            vmem_limit_bytes=vmem_limit),
    )(weights, gt2, preds2)

    # Deferred normalization + final reduction (cheap: num_bt * b_tile rows).
    loss_rows = loss_sums[:, :, 0].reshape(-1)
    nv_rows = num_valid[:, :, 0].reshape(-1)
    return jnp.sum(loss_rows / (nv_rows + 1e-8))


def _reference_loss(seq_pred, gt, *, max_depth, gamma, t_valid=1e-4):
    """Pure-JAX reference mirroring the PyTorch module exactly."""
    gt = jnp.clip(gt, 0.0, max_depth)
    seq_pred = [jnp.clip(p, 0.0, max_depth) for p in seq_pred]
    mask = (gt > t_valid).astype(seq_pred[0].dtype)
    mask_u = mask[:, :, :, 1:] * mask[:, :, :, :-1]
    mask_v = mask[:, :, 1:, :] * mask[:, :, :-1, :]
    num_valid = jnp.sum(mask_u, axis=(1, 2, 3)) + jnp.sum(mask_v, axis=(1, 2, 3))
    n = len(seq_pred)
    loss = 0.0
    for i in range(n):
        w = gamma ** (n - 1 - i)
        residual = seq_pred[i] - gt
        gu = jnp.abs(residual[:, :, :, 1:] - residual[:, :, :, :-1])
        gv = jnp.abs(residual[:, :, 1:, :] - residual[:, :, :-1, :])
        lu = jnp.nan_to_num(mask_u * gu)
        lv = jnp.nan_to_num(mask_v * gv)
        i_lu = jnp.sum(lu, axis=(1, 2, 3)) / (num_valid + 1e-8)
        i_lv = jnp.sum(lv, axis=(1, 2, 3)) / (num_valid + 1e-8)
        loss = loss + w * jnp.sum(i_lu + i_lv)
    return loss


if __name__ == "__main__":
    # Synthetic "args": max_depth and sequence_loss_decay (gamma).
    MAX_DEPTH = 10.0
    GAMMA = 0.8

    key = jax.random.PRNGKey(0)

    def _make_inputs(key, n_pred, b, c, h, w):
        k_gt, k_hole, *k_preds = jax.random.split(key, 2 + n_pred)
        gt = jax.random.uniform(k_gt, (b, c, h, w), jnp.float32, 0.0, MAX_DEPTH)
        holes = (jax.random.uniform(k_hole, (b, c, h, w)) > 0.3).astype(jnp.float32)
        gt = gt * holes                        # invalid (zero) pixels -> mask
        preds = [jax.random.uniform(k, (b, c, h, w), jnp.float32,
                                    -1.0, MAX_DEPTH + 1.0) for k in k_preds]
        return preds, gt

    # --- float32 path vs. pure-JAX reference (B=2, C=1, 16x16, 3 preds) ---
    seq_pred, gt = _make_inputs(key, 3, 2, 1, 16, 16)
    out = jax.block_until_ready(
        grad_matching_loss(seq_pred, gt, max_depth=MAX_DEPTH, gamma=GAMMA))
    ref = jax.block_until_ready(
        _reference_loss(seq_pred, gt, max_depth=MAX_DEPTH, gamma=GAMMA))
    assert jnp.allclose(out, ref, rtol=1e-5, atol=1e-4), (out, ref)

    # --- bf16 storage path (halves HBM traffic; in-kernel math stays f32) ---
    gt_bf16 = gt.astype(jnp.bfloat16)
    seq_pred_bf16 = [p.astype(jnp.bfloat16) for p in seq_pred]
    out_bf16 = jax.block_until_ready(
        grad_matching_loss(seq_pred_bf16, gt_bf16,
                           max_depth=MAX_DEPTH, gamma=GAMMA))
    ref_bf16 = jax.block_until_ready(
        _reference_loss([p.astype(jnp.float32) for p in seq_pred_bf16],
                        gt_bf16.astype(jnp.float32),
                        max_depth=MAX_DEPTH, gamma=GAMMA))
    assert jnp.allclose(out_bf16, ref_bf16, rtol=1e-4, atol=1e-3), (
        out_bf16, ref_bf16)

    # --- odd batch, multi-channel (exercises channel/row boundary masks) ---
    seq_pred2, gt2 = _make_inputs(jax.random.PRNGKey(1), 2, 3, 2, 8, 16)
    out2 = jax.block_until_ready(
        grad_matching_loss(seq_pred2, gt2, max_depth=MAX_DEPTH, gamma=GAMMA))
    ref2 = jax.block_until_ready(
        _reference_loss(seq_pred2, gt2, max_depth=MAX_DEPTH, gamma=GAMMA))
    assert jnp.allclose(out2, ref2, rtol=1e-5, atol=1e-4), (out2, ref2)

    print("KERNEL_OK")
</pallas_src>

<mosaic_0001>
module attributes {stable_mosaic.version = 11 : i64} {
  func.func @_grad_matching_kernel(%arg0: i32, %arg1: i32, %arg2: memref<3xf32, #tpu.memory_space<smem>>, %arg3: memref<2x256xf32, #tpu.memory_space<vmem>>, %arg4: memref<1x2x256xf32, #tpu.memory_space<vmem>>, %arg5: memref<1x2x128xf32, #tpu.memory_space<vmem>>, %arg6: memref<1x2x128xf32, #tpu.memory_space<vmem>>, %arg7: memref<2x256xf32, #tpu.memory_space<vmem>>, %arg8: memref<2x256xbf16, #tpu.memory_space<vmem>>, %arg9: memref<2x256xbf16, #tpu.memory_space<vmem>>) attributes {dimension_semantics = [#tpu.dimension_semantics<parallel>, #tpu.dimension_semantics<arbitrary>], iteration_bounds = array<i64: 1, 3>, scalar_prefetch = 0 : i64, scratch_operands = 3 : i64, tpu.core_type = #tpu.core_type<tc>, window_params = [{transform_indices = @transform_0, window_bounds = array<i64: 3>}, {transform_indices = @transform_1, window_bounds = array<i64: 2, 256>}, {transform_indices = @transform_2, window_bounds = array<i64: 1, 2, 256>}, {transform_indices = @transform_3, window_bounds = array<i64: 1, 2, 128>}, {transform_indices = @transform_4, window_bounds = array<i64: 1, 2, 128>}]} {
    %c0_i32 = arith.constant 0 : i32
    %0 = arith.cmpi eq, %arg1, %c0_i32 : i32
    %1 = arith.extui %0 : i1 to i32
    %c0_i32_0 = arith.constant 0 : i32
    %2 = arith.cmpi ne, %1, %c0_i32_0 : i32
    scf.if %2 {
      %cst_19 = arith.constant 0.000000e+00 : f32
      %41 = vector.broadcast %cst_19 : f32 to vector<1x2x128xf32>
      %c0_20 = arith.constant 0 : index
      %c0_21 = arith.constant 0 : index
      %c0_22 = arith.constant 0 : index
      %42 = vector.load %arg5[%c0_20, %c0_21, %c0_22] : memref<1x2x128xf32, #tpu.memory_space<vmem>>, vector<1x2x128xf32>
      tpu.vector_store %arg5[%c0_20, %c0_21, %c0_22], %41 {strides = array<i32>} : memref<1x2x128xf32, #tpu.memory_space<vmem>>, vector<1x2x128xf32>,
      %c0_23 = arith.constant 0 : index
      %c0_24 = arith.constant 0 : index
      %43 = vector.load %arg3[%c0_23, %c0_24] : memref<2x256xf32, #tpu.memory_space<vmem>>, vector<2x256xf32>
      %cst_25 = arith.constant 0.000000e+00 : f32
      %cst_26 = arith.constant 1.000000e+01 : f32
      %44 = vector.broadcast %cst_25 : f32 to vector<2x256xf32>
      %45 = arith.maximumf %44, %43 : vector<2x256xf32>
      %46 = vector.broadcast %cst_26 : f32 to vector<2x256xf32>
      %47 = arith.minimumf %46, %45 : vector<2x256xf32>
      %c0_27 = arith.constant 0 : index
      %c0_28 = arith.constant 0 : index
      %48 = vector.load %arg7[%c0_27, %c0_28] : memref<2x256xf32, #tpu.memory_space<vmem>>, vector<2x256xf32>
      tpu.vector_store %arg7[%c0_27, %c0_28], %47 {strides = array<i32>} : memref<2x256xf32, #tpu.memory_space<vmem>>, vector<2x256xf32>,
      %cst_29 = arith.constant 9.99999974E-5 : f32
      %49 = vector.broadcast %cst_29 : f32 to vector<2x256xf32>
      %50 = arith.cmpf ogt, %47, %49 : vector<2x256xf32>
      %51 = arith.extui %50 : vector<2x256xi1> to vector<2x256xi32>
      %52 = arith.sitofp %51 : vector<2x256xi32> to vector<2x256xf32>
      %53 = tpu.iota {dimensions = array<i32: 1>} : vector<2x256xi32>
      %c16_i32_30 = arith.constant 16 : i32
      %c0_i32_31 = arith.constant 0 : i32
      %54 = arith.cmpi eq, %c16_i32_30, %c0_i32_31 : i32
      %c1_i32_32 = arith.constant 1 : i32
      %55 = arith.select %54, %c1_i32_32, %c16_i32_30 : i32
      %56 = vector.broadcast %55 : i32 to vector<2x256xi32>
      %57 = arith.remsi %53, %56 : vector<2x256xi32>
      %c0_i32_33 = arith.constant 0 : i32
      %58 = vector.broadcast %c0_i32_33 : i32 to vector<2x256xi32>
      %59 = arith.cmpi ne, %57, %58 : vector<2x256xi32>
      %c0_i32_34 = arith.constant 0 : i32
      %60 = vector.broadcast %c0_i32_34 : i32 to vector<2x256xi32>
      %61 = arith.cmpi slt, %57, %60 : vector<2x256xi32>
      %c0_i32_35 = arith.constant 0 : i32
      %62 = arith.cmpi slt, %55, %c0_i32_35 : i32
      %63 = vector.broadcast %62 : i1 to vector<2x256xi1>
      %64 = vector.broadcast %63 : vector<2x256xi1> to vector<2x256xi1>
      %65 = arith.xori %61, %64 : vector<2x256xi1>
      %66 = arith.andi %65, %59 : vector<2x256xi1>
      %67 = vector.broadcast %55 : i32 to vector<2x256xi32>
      %68 = arith.addi %57, %67 : vector<2x256xi32>
      %69 = arith.select %66, %68, %57 : vector<2x256xi1>, vector<2x256xi32>
      %c0_i32_36 = arith.constant 0 : i32
      %70 = vector.broadcast %c0_i32_36 : i32 to vector<2x256xi32>
      %71 = arith.cmpi ne, %69, %70 : vector<2x256xi32>
      %72 = arith.extui %71 : vector<2x256xi1> to vector<2x256xi32>
      %73 = arith.sitofp %72 : vector<2x256xi32> to vector<2x256xf32>
      %c256_i32 = arith.constant 256 : i32
      %c0_i32_37 = arith.constant 0 : i32
      %74 = arith.cmpi eq, %c256_i32, %c0_i32_37 : i32
      %c1_i32_38 = arith.constant 1 : i32
      %75 = arith.select %74, %c1_i32_38, %c256_i32 : i32
      %76 = vector.broadcast %75 : i32 to vector<2x256xi32>
      %77 = arith.remsi %53, %76 : vector<2x256xi32>
      %c0_i32_39 = arith.constant 0 : i32
      %78 = vector.broadcast %c0_i32_39 : i32 to vector<2x256xi32>
      %79 = arith.cmpi ne, %77, %78 : vector<2x256xi32>
      %c0_i32_40 = arith.constant 0 : i32
      %80 = vector.broadcast %c0_i32_40 : i32 to vector<2x256xi32>
      %81 = arith.cmpi slt, %77, %80 : vector<2x256xi32>
      %c0_i32_41 = arith.constant 0 : i32
      %82 = arith.cmpi slt, %75, %c0_i32_41 : i32
      %83 = vector.broadcast %82 : i1 to vector<2x256xi1>
      %84 = vector.broadcast %83 : vector<2x256xi1> to vector<2x256xi1>
      %85 = arith.xori %81, %84 : vector<2x256xi1>
      %86 = arith.andi %85, %79 : vector<2x256xi1>
      %87 = vector.broadcast %75 : i32 to vector<2x256xi32>
      %88 = arith.addi %77, %87 : vector<2x256xi32>
      %89 = arith.select %86, %88, %77 : vector<2x256xi1>, vector<2x256xi32>
      %c16_i32_42 = arith.constant 16 : i32
      %90 = vector.broadcast %c16_i32_42 : i32 to vector<2x256xi32>
      %91 = arith.cmpi sge, %89, %90 : vector<2x256xi32>
      %92 = arith.extui %91 : vector<2x256xi1> to vector<2x256xi32>
      %93 = arith.sitofp %92 : vector<2x256xi32> to vector<2x256xf32>
      %c1_i32_43 = arith.constant 1 : i32
      %94 = tpu.dynamic_rotate %52 by %c1_i32_43 dim 1 : vector<2x256xf32>, i32 -> vector<2x256xf32>
      %95 = arith.mulf %52, %94 : vector<2x256xf32>
      %96 = arith.mulf %95, %73 : vector<2x256xf32>
      %c16_i32_44 = arith.constant 16 : i32
      %97 = tpu.dynamic_rotate %52 by %c16_i32_44 dim 1 : vector<2x256xf32>, i32 -> vector<2x256xf32>
      %98 = arith.mulf %52, %97 : vector<2x256xf32>
      %99 = arith.mulf %98, %93 : vector<2x256xf32>
      %100 = arith.truncf %96 : vector<2x256xf32> to vector<2x256xbf16>
      %c0_45 = arith.constant 0 : index
      %c0_46 = arith.constant 0 : index
      %101 = vector.load %arg8[%c0_45, %c0_46] : memref<2x256xbf16, #tpu.memory_space<vmem>>, vector<2x256xbf16>
      tpu.vector_store %arg8[%c0_45, %c0_46], %100 {strides = array<i32>} : memref<2x256xbf16, #tpu.memory_space<vmem>>, vector<2x256xbf16>,
      %102 = arith.truncf %99 : vector<2x256xf32> to vector<2x256xbf16>
      %c0_47 = arith.constant 0 : index
      %c0_48 = arith.constant 0 : index
      %103 = vector.load %arg9[%c0_47, %c0_48] : memref<2x256xbf16, #tpu.memory_space<vmem>>, vector<2x256xbf16>
      tpu.vector_store %arg9[%c0_47, %c0_48], %102 {strides = array<i32>} : memref<2x256xbf16, #tpu.memory_space<vmem>>, vector<2x256xbf16>,
      %104 = arith.addf %96, %99 : vector<2x256xf32>
      %cst_49 = arith.constant dense<0.000000e+00> : vector<2xf32>
      %105 = vector.multi_reduction <add>, %104, %cst_49 [1] : vector<2x256xf32> to vector<2xf32>
      %106 = vector.shape_cast %105 : vector<2xf32> to vector<2x1xf32>
      %107 = vector.shape_cast %106 : vector<2x1xf32> to vector<1x2x1xf32>
      %108 = vector.broadcast %107 : vector<1x2x1xf32> to vector<1x2x128xf32>
      %c0_50 = arith.constant 0 : index
      %c0_51 = arith.constant 0 : index
      %c0_52 = arith.constant 0 : index
      %109 = vector.load %arg6[%c0_50, %c0_51, %c0_52] : memref<1x2x128xf32, #tpu.memory_space<vmem>>, vector<1x2x128xf32>
      tpu.vector_store %arg6[%c0_50, %c0_51, %c0_52], %108 {strides = array<i32>} : memref<1x2x128xf32, #tpu.memory_space<vmem>>, vector<1x2x128xf32>,
    } else {
    }
    %c0 = arith.constant 0 : index
    %c0_1 = arith.constant 0 : index
    %c0_2 = arith.constant 0 : index
    %3 = vector.load %arg4[%c0, %c0_1, %c0_2] : memref<1x2x256xf32, #tpu.memory_space<vmem>>, vector<1x2x256xf32>
    %4 = vector.shape_cast %3 : vector<1x2x256xf32> to vector<2x256xf32>
    %cst = arith.constant 0.000000e+00 : f32
    %cst_3 = arith.constant 1.000000e+01 : f32
    %5 = vector.broadcast %cst : f32 to vector<2x256xf32>
    %6 = arith.maximumf %5, %4 : vector<2x256xf32>
    %7 = vector.broadcast %cst_3 : f32 to vector<2x256xf32>
    %8 = arith.minimumf %7, %6 : vector<2x256xf32>
    %c0_4 = arith.constant 0 : index
    %c0_5 = arith.constant 0 : index
    %9 = vector.load %arg7[%c0_4, %c0_5] : memref<2x256xf32, #tpu.memory_space<vmem>>, vector<2x256xf32>
    %10 = arith.subf %8, %9 : vector<2x256xf32>
    %c1_i32 = arith.constant 1 : i32
    %11 = tpu.dynamic_rotate %10 by %c1_i32 dim 1 : vector<2x256xf32>, i32 -> vector<2x256xf32>
    %12 = arith.subf %10, %11 : vector<2x256xf32>
    %13 = math.absf %12 : vector<2x256xf32>
    %c16_i32 = arith.constant 16 : i32
    %14 = tpu.dynamic_rotate %10 by %c16_i32 dim 1 : vector<2x256xf32>, i32 -> vector<2x256xf32>
    %15 = arith.subf %10, %14 : vector<2x256xf32>
    %16 = math.absf %15 : vector<2x256xf32>
    %c0_6 = arith.constant 0 : index
    %c0_7 = arith.constant 0 : index
    %17 = vector.load %arg8[%c0_6, %c0_7] : memref<2x256xbf16, #tpu.memory_space<vmem>>, vector<2x256xbf16>
    %18 = arith.extf %17 : vector<2x256xbf16> to vector<2x256xf32>
    %19 = arith.mulf %18, %13 : vector<2x256xf32>
    %c0_8 = arith.constant 0 : index
    %c0_9 = arith.constant 0 : index
    %20 = vector.load %arg9[%c0_8, %c0_9] : memref<2x256xbf16, #tpu.memory_space<vmem>>, vector<2x256xbf16>
    %21 = arith.extf %20 : vector<2x256xbf16> to vector<2x256xf32>
    %22 = arith.mulf %21, %16 : vector<2x256xf32>
    %23 = arith.cmpf one, %19, %19 : vector<2x256xf32>
    %cst_10 = arith.constant 0.000000e+00 : f32
    %24 = vector.broadcast %cst_10 : f32 to vector<2x256xf32>
    %25 = arith.select %23, %24, %19 : vector<2x256xi1>, vector<2x256xf32>
    %26 = arith.cmpf one, %22, %22 : vector<2x256xf32>
    %cst_11 = arith.constant 0.000000e+00 : f32
    %27 = vector.broadcast %cst_11 : f32 to vector<2x256xf32>
    %28 = arith.select %26, %27, %22 : vector<2x256xi1>, vector<2x256xf32>
    %29 = arith.addf %25, %28 : vector<2x256xf32>
    %cst_12 = arith.constant dense<0.000000e+00> : vector<2xf32>
    %30 = vector.multi_reduction <add>, %29, %cst_12 [1] : vector<2x256xf32> to vector<2xf32>
    %31 = vector.shape_cast %30 : vector<2xf32> to vector<2x1xf32>
    %c0_13 = arith.constant 0 : index
    %c0_14 = arith.constant 0 : index
    %c0_15 = arith.constant 0 : index
    %32 = vector.load %arg5[%c0_13, %c0_14, %c0_15] : memref<1x2x128xf32, #tpu.memory_space<vmem>>, vector<1x2x128xf32>
    %33 = arith.index_cast %arg1 : i32 to index
    %34 = memref.load %arg2[%33] : memref<3xf32, #tpu.memory_space<smem>>
    %35 = vector.broadcast %34 : f32 to vector<2x1xf32>
    %36 = arith.mulf %35, %31 : vector<2x1xf32>
    %37 = vector.shape_cast %36 : vector<2x1xf32> to vector<1x2x1xf32>
    %38 = vector.broadcast %37 : vector<1x2x1xf32> to vector<1x2x128xf32>
    %39 = arith.addf %32, %38 : vector<1x2x128xf32>
    %c0_16 = arith.constant 0 : index
    %c0_17 = arith.constant 0 : index
    %c0_18 = arith.constant 0 : index
    %40 = vector.load %arg5[%c0_16, %c0_17, %c0_18] : memref<1x2x128xf32, #tpu.memory_space<vmem>>, vector<1x2x128xf32>
    tpu.vector_store %arg5[%c0_16, %c0_17, %c0_18], %39 {strides = array<i32>} : memref<1x2x128xf32, #tpu.memory_space<vmem>>, vector<1x2x128xf32>,
    return
  }
  func.func @transform_0(%arg0: i32, %arg1: i32) -> i32 {
    %c0_i32 = arith.constant 0 : i32
    %c0_i32_0 = arith.constant 0 : i32
    return %c0_i32 : i32
  }
  func.func @transform_1(%arg0: i32, %arg1: i32) -> (i32, i32) {
    %c0_i32 = arith.constant 0 : i32
    %c0_i32_0 = arith.constant 0 : i32
    return %arg0, %c0_i32 : i32, i32
  }
  func.func @transform_2(%arg0: i32, %arg1: i32) -> (i32, i32, i32) {
    %c0_i32 = arith.constant 0 : i32
    %c0_i32_0 = arith.constant 0 : i32
    return %arg1, %arg0, %c0_i32 : i32, i32, i32
  }
  func.func @transform_3(%arg0: i32, %arg1: i32) -> (i32, i32, i32) {
    %c0_i32 = arith.constant 0 : i32
    %c0_i32_0 = arith.constant 0 : i32
    %c0_i32_1 = arith.constant 0 : i32
    return %arg0, %c0_i32, %c0_i32_0 : i32, i32, i32
  }
  func.func @transform_4(%arg0: i32, %arg1: i32) -> (i32, i32, i32) {
    %c0_i32 = arith.constant 0 : i32
    %c0_i32_0 = arith.constant 0 : i32
    %c0_i32_1 = arith.constant 0 : i32
    return %arg0, %c0_i32, %c0_i32_0 : i32, i32, i32
  }
}

</mosaic_0001>

<llo_original>
// kernel: tpu_custom_call.1
$region0: #{tpu_custom_call.1}
  #allocation0 [shape = 'u32[]', space=smem, size = 0x4, offset = 0x4, fixed_abs, tag = 'smem constant byte address 0x4 - core index']
  #allocation1 [shape = 'u32[72,128]{1,0:T(1,128)}', space=vmem, size = 0x9000, scoped, tag = 'internal scratch']
  #allocation2 [shape = 'f32[2,256]{1,0:T(2,128)}', space=vmem, size = 0x800, scoped, tag = 'scratch operand']
  #allocation3 [shape = 'bf16[2,256]{1,0:T(2,128)(2,1)}', space=vmem, size = 0x400, scoped, tag = 'scratch operand']
  #allocation4 [shape = 'bf16[2,256]{1,0:T(2,128)(2,1)}', space=vmem, size = 0x400, scoped, tag = 'scratch operand']
  %s0 = inlined_call_operand.hbm [shape: f32[3], index: 0, kind: input, shape index: {}]
  %s1 = inlined_call_operand.hbm [shape: f32[2,256], index: 1, kind: input, shape index: {}]
  %s2 = inlined_call_operand.hbm [shape: f32[3,2,256], index: 2, kind: input, shape index: {}]
  %s3 = inlined_call_operand.hbm [shape: f32[1,2,128], index: 3, kind: output, shape index: {0}]
  %s4 = inlined_call_operand.hbm [shape: f32[1,2,128], index: 4, kind: output, shape index: {1}]
  %5 = xla_tuple %s3, %s4
  %s6 = sld [smem:[#allocation0]]
  $region69: #{tpu_custom_call.1} parent=0
    _
  %s8 = ssub.s32 1, %s6
  %s9 = scalar_select 0, %s8, %s6
  $region1: #{tpu_custom_call.1} parent=0
    #allocation5 [shape = 'u8[512]{0}', space=smem, size = 0x200, scoped, tag = 'input window, operand 0, single buffered']
    #allocation6 [shape = 's32[2]{0}', space=sflag, size = 0x8, scoped, tag = 'scoped memory for tpu_custom_call.1']
    #allocation7 [shape = 's32[2]{0}', space=sflag, size = 0x8, scoped, tag = 'scoped memory for tpu_custom_call.1']
    #allocation8 [shape = 's32[2]{0}', space=sflag, size = 0x8, scoped, tag = 'scoped memory for tpu_custom_call.1']
    #allocation9 [shape = 'u8[2048]{0}', space=vmem, size = 0x800, scoped, tag = 'input window, operand 1, single buffered']
    #allocation10 [shape = 'u8[4096]{0}', space=vmem, size = 0x1000, scoped, tag = 'input window, operand 2']
    #allocation11 [shape = 's32[2]{0}', space=sflag, size = 0x8, scoped, tag = 'scoped memory for tpu_custom_call.1']
    #allocation12 [shape = 'u8[1024]{0}', space=vmem, size = 0x400, scoped, tag = 'output window, operand 0, single buffered']
    #allocation13 [shape = 'u8[1024]{0}', space=vmem, size = 0x400, scoped, tag = 'output window, operand 1, single buffered']
    #allocation14 [shape = 's32[1]{0}', space=sflag, size = 0x4, scoped, tag = 'scoped memory for tpu_custom_call.1']
    %10 = vsyncpa [#allocation8], 0
    %11 = vsyncpa [#allocation6], 0
    %12 = vsyncpa [#allocation11], 0
    %s13 = scalar_lea.sflag [#allocation11], 1
    %14 = vsyncpa %s13, 0
    %15 = vsyncpa [#allocation7], 0
    %16 = vsyncpa [#allocation14], 0
    loop: start=0, step=1, limit=5
    $region2: #{tpu_custom_call.1} parent=1 // loop_pre_header
      _
    $region3: #{tpu_custom_call.1} parent=1 // loop_header
      %s18 = sphi 0, %s22
      %p19 = scmp.ge.s32.totalorder %s18, 5
      %s25 = sphi 0, %s37
      %s26 = sphi 0, %s33
      %s27 = sphi 0, %s25
      %s28 = sphi 0, %s26
      %s29 = sphi 0, %s27
      %s30 = sphi 0, %s28
      %s38 = sphi 0, %s38
      %s40 = sphi 0, %s38
      %s41 = sphi 0, %s40
      %s55 = sphi 0, %s41
      %s61 = sphi 0, %s63
      %s64 = sphi 0, %s61
      %s65 = sphi 0, %s64
      %s81 = sphi 0, %s65
      %s89 = sphi 0, %s91
      %s92 = sphi 0, %s89
      %s93 = sphi 0, %s92
      %s109 = sphi 0, %s93
      %s115 = sphi 0, %s117
      %s118 = sphi 0, %s115
      %s119 = sphi 0, %s118
      %s135 = sphi 0, %s119
      %s141 = sphi 0, %s143
      %s144 = sphi 0, %s141
      %s145 = sphi 0, %s144
      %s161 = sphi 0, %s145
    $region4: #{tpu_custom_call.1} parent=1 // loop_header_branch
      %21 = sbr.rel (%p19) target = $region8
    $region5: #{tpu_custom_call.1} parent=1 // loop_body
      %s23 = ssub.s32 %s18, 1
      %s24 = ssub.s32 %s18, 2
      %s31 = sadd.s32 1, %s26
      %p32 = scmp.ge.s32.totalorder %s31, 3
      %s33 = scalar_select %p32, 0, %s31
      %s34 = sadd.s32 1, %s25
      %s35 = scalar_select %p32, %s34, %s25
      %p36 = scmp.ge.s32.totalorder %s35, 1
      %s37 = scalar_select %p36, 0, %s35
      %s39 = sadd.s32 %s38, 1
      %p42 = scmp.eq.s32.totalorder %s18, 2
      %p43 = scmp.ne.s32.totalorder %s38, %s40
      %p44 = scmp.eq.s32.totalorder %s18, 0
      %p45 = por %p43, %p44
      %p46 = scmp.ne.s32.totalorder %s38, %s40
      %p47 = scmp.eq.s32.totalorder %s23, 2
      %p48 = por %p46, %p47
      %p49 = scmp.ne.s32.totalorder %s40, %s41
      %p50 = scmp.eq.s32.totalorder %s23, 0
      %p51 = por %p49, %p50
      %p52 = scmp.ne.s32.totalorder %s40, %s41
      %p53 = scmp.eq.s32.totalorder %s24, 2
      %p54 = por %p52, %p53
      %p56 = scmp.ne.s32.totalorder %s41, %s55
      %p57 = scmp.eq.s32.totalorder %s24, 0
      %p58 = por %p56, %p57
      %s59 = ssub.s32 %s25, %s37
      %p60 = scmp.eq.s32.totalorder %s59, 0
      %s62 = sadd.s32 %s61, 1
      %s63 = scalar_select %p60, %s61, %s62
      %p66 = pneg %p60
      %p67 = scmp.eq.s32.totalorder %s18, 2
      %p68 = por %p66, %p67
      %p69 = scmp.ne.s32.totalorder %s61, %s64
      %p70 = scmp.eq.s32.totalorder %s18, 0
      %p71 = por %p69, %p70
      %p72 = scmp.ne.s32.totalorder %s61, %s64
      %p73 = scmp.eq.s32.totalorder %s23, 2
      %p74 = por %p72, %p73
      %p75 = scmp.ne.s32.totalorder %s64, %s65
      %p76 = scmp.eq.s32.totalorder %s23, 0
      %p77 = por %p75, %p76
      %p78 = scmp.ne.s32.totalorder %s64, %s65
      %p79 = scmp.eq.s32.totalorder %s24, 2
      %p80 = por %p78, %p79
      %p82 = scmp.ne.s32.totalorder %s65, %s81
      %p83 = scmp.eq.s32.totalorder %s24, 0
      %p84 = por %p82, %p83
      %s85 = ssub.s32 %s26, %s33
      %s86 = ssub.s32 %s25, %s37
      %s87 = sor.u32 %s85, %s86
      %p88 = scmp.eq.s32.totalorder %s87, 0
      %s90 = sadd.s32 %s89, 1
      %s91 = scalar_select %p88, %s89, %s90
      %p94 = pneg %p88
      %p95 = scmp.eq.s32.totalorder %s18, 2
      %p96 = por %p94, %p95
      %p97 = scmp.ne.s32.totalorder %s89, %s92
      %p98 = scmp.eq.s32.totalorder %s18, 0
      %p99 = por %p97, %p98
      %p100 = scmp.ne.s32.totalorder %s89, %s92
      %p101 = scmp.eq.s32.totalorder %s23, 2
      %p102 = por %p100, %p101
      %p103 = scmp.ne.s32.totalorder %s92, %s93
      %p104 = scmp.eq.s32.totalorder %s23, 0
      %p105 = por %p103, %p104
      %p106 = scmp.ne.s32.totalorder %s92, %s93
      %p107 = scmp.eq.s32.totalorder %s24, 2
      %p108 = por %p106, %p107
      %p110 = scmp.ne.s32.totalorder %s93, %s109
      %p111 = scmp.eq.s32.totalorder %s24, 0
      %p112 = por %p110, %p111
      %s113 = ssub.s32 %s25, %s37
      %p114 = scmp.eq.s32.totalorder %s113, 0
      %s116 = sadd.s32 %s115, 1
      %s117 = scalar_select %p114, %s115, %s116
      %p120 = pneg %p114
      %p121 = scmp.eq.s32.totalorder %s18, 2
      %p122 = por %p120, %p121
      %p123 = scmp.ne.s32.totalorder %s115, %s118
      %p124 = scmp.eq.s32.totalorder %s18, 0
      %p125 = por %p123, %p124
      %p126 = scmp.ne.s32.totalorder %s115, %s118
      %p127 = scmp.eq.s32.totalorder %s23, 2
      %p128 = por %p126, %p127
      %p129 = scmp.ne.s32.totalorder %s118, %s119
      %p130 = scmp.eq.s32.totalorder %s23, 0
      %p131 = por %p129, %p130
      %p132 = scmp.ne.s32.totalorder %s118, %s119
      %p133 = scmp.eq.s32.totalorder %s24, 2
      %p134 = por %p132, %p133
      %p136 = scmp.ne.s32.totalorder %s119, %s135
      %p137 = scmp.eq.s32.totalorder %s24, 0
      %p138 = por %p136, %p137
      %s139 = ssub.s32 %s25, %s37
      %p140 = scmp.eq.s32.totalorder %s139, 0
      %s142 = sadd.s32 %s141, 1
      %s143 = scalar_select %p140, %s141, %s142
      %p146 = pneg %p140
      %p147 = scmp.eq.s32.totalorder %s18, 2
      %p148 = por %p146, %p147
      %p149 = scmp.ne.s32.totalorder %s141, %s144
      %p150 = scmp.eq.s32.totalorder %s18, 0
      %p151 = por %p149, %p150
      %p152 = scmp.ne.s32.totalorder %s141, %s144
      %p153 = scmp.eq.s32.totalorder %s23, 2
      %p154 = por %p152, %p153
      %p155 = scmp.ne.s32.totalorder %s144, %s145
      %p156 = scmp.eq.s32.totalorder %s23, 0
      %p157 = por %p155, %p156
      %p158 = scmp.ne.s32.totalorder %s144, %s145
      %p159 = scmp.eq.s32.totalorder %s24, 2
      %p160 = por %p158, %p159
      %p162 = scmp.ne.s32.totalorder %s145, %s161
      %p163 = scmp.eq.s32.totalorder %s24, 0
      %p164 = por %p162, %p163
      %p165 = scmp.le.s32.totalorder 1, %s18
      %p166 = scmp.lt.s32.totalorder %s18, 4
      %p167 = pnand %p165, %p166
      %p168 = pneg %p167
      // Predicated region
      $region9: #{tpu_custom_call.1} parent=5 // pred_check
        _
      $region10: #{tpu_custom_call.1} parent=5 // pred_check_branch
        %170 = sbr.rel (%p167) target = $region12
      $region11: #{tpu_custom_call.1} parent=5 // pred_region
        %s171 = ssub.s32 %s18, 1
        // Predicated region
        $region13: #{tpu_custom_call.1} parent=11 // pred_check
          %p172 = pneg %p51
        $region14: #{tpu_custom_call.1} parent=11 // pred_check_branch
          %174 = sbr.rel (%p172) target = $region16
        $region15: #{tpu_custom_call.1} parent=11 // pred_region
          %176 = vsyncadd [#allocation8], 0
          %s178 = sshll.u32 %s0, 4
          %s179 = int_to_ptr.hbm [resolvable:$true] %s178
          %181 = dma.hbm_to_smem %s179, 16, [#allocation5], [#allocation8]
        $region16: #{tpu_custom_call.1} parent=11 // pred_fallthru
          _
        // Predicated region
        $region17: #{tpu_custom_call.1} parent=11 // pred_check
          %p182 = pneg %p77
        $region18: #{tpu_custom_call.1} parent=11 // pred_check_branch
          %184 = sbr.rel (%p182) target = $region20
        $region19: #{tpu_custom_call.1} parent=11 // pred_region
          %186 = vsyncadd [#allocation6], 0
          %s187 = smul.addr %s27, 2
          %s188 = smul.addr %s187, 2
          %s189 = scalar_lea.hbm %s1, %s188
          %s191 = sshll.u32 %s189, 4
          %s192 = int_to_ptr.hbm [resolvable:$true] %s191
          %s193 = sshll.u32 [#allocation9], 4
          %s194 = int_to_ptr.vmem [resolvable:$true] %s193
          %196 = dma.hbm_to_vmem [thread:$0]  %s192, 64, %s194, [#allocation6]
        $region20: #{tpu_custom_call.1} parent=11 // pred_fallthru
          _
      $region12: #{tpu_custom_call.1} parent=5 // pred_fallthru
        _
      %p197 = scmp.lt.s32.totalorder %s18, 3
      // Predicated region
      $region21: #{tpu_custom_call.1} parent=5 // pred_check
        %p198 = pneg %p197
      $region22: #{tpu_custom_call.1} parent=5 // pred_check_branch
        %200 = sbr.rel (%p198) target = $region24
      $region23: #{tpu_custom_call.1} parent=5 // pred_region
        // Predicated region
        $region25: #{tpu_custom_call.1} parent=23 // pred_check
          %p201 = pneg %p99
        $region26: #{tpu_custom_call.1} parent=23 // pred_check_branch
          %203 = sbr.rel (%p201) target = $region28
        $region27: #{tpu_custom_call.1} parent=23 // pred_region
          %s204 = sand.u32 %s89, 1
          %s205 = scalar_lea.sflag [#allocation11], %s204
          %s206 = sand.u32 %s89, 1
          %s207 = smul.addr %s206, 4
          %s208 = scalar_lea.vmem [#allocation10], %s207
          %210 = vsyncadd %s205, 0
          %s211 = smul.addr %s25, 2
          %s212 = smul.addr %s26, 2
          %s213 = sadd.s32 %s211, %s212
          %s214 = smul.addr %s213, 2
          %s215 = scalar_lea.hbm %s2, %s214
          %s217 = sshll.u32 %s215, 4
          %s218 = int_to_ptr.hbm [resolvable:$true] %s217
          %s219 = sshll.u32 %s208, 4
          %s220 = int_to_ptr.vmem [resolvable:$true] %s219
          %222 = dma.hbm_to_vmem [thread:$0]  %s218, 64, %s220, %s205
        $region28: #{tpu_custom_call.1} parent=23 // pred_fallthru
          _
      $region24: #{tpu_custom_call.1} parent=5 // pred_fallthru
        _
      %p223 = scmp.le.s32.totalorder 1, %s18
      %p224 = scmp.lt.s32.totalorder %s18, 4
      %p225 = pnand %p223, %p224
      %p226 = pneg %p225
      // Predicated region
      $region29: #{tpu_custom_call.1} parent=5 // pred_check
        _
      $region30: #{tpu_custom_call.1} parent=5 // pred_check_branch
        %228 = sbr.rel (%p225) target = $region32
      $region31: #{tpu_custom_call.1} parent=5 // pred_region
        %s229 = ssub.s32 %s18, 1
        // Predicated region
        $region33: #{tpu_custom_call.1} parent=31 // pred_check
          %p230 = pneg %p51
        $region34: #{tpu_custom_call.1} parent=31 // pred_check_branch
          %232 = sbr.rel (%p230) target = $region36
        $region35: #{tpu_custom_call.1} parent=31 // pred_region
          %234 = dma.done [#allocation8], 16
        $region36: #{tpu_custom_call.1} parent=31 // pred_fallthru
          _
        // Predicated region
        $region37: #{tpu_custom_call.1} parent=31 // pred_check
          %p235 = pneg %p77
        $region38: #{tpu_custom_call.1} parent=31 // pred_check_branch
          %237 = sbr.rel (%p235) target = $region40
        $region39: #{tpu_custom_call.1} parent=31 // pred_region
          %239 = dma.done [#allocation6], 64
        $region40: #{tpu_custom_call.1} parent=31 // pred_fallthru
          _
        %s240 = sand.u32 %s92, 1
        %s241 = scalar_lea.sflag [#allocation11], %s240
        %s242 = sand.u32 %s92, 1
        %s243 = smul.addr %s242, 4
        %s244 = scalar_lea.vmem [#allocation10], %s243
        // Predicated region
        $region41: #{tpu_custom_call.1} parent=31 // pred_check
          %p245 = pneg %p105
        $region42: #{tpu_custom_call.1} parent=31 // pred_check_branch
          %247 = sbr.rel (%p245) target = $region44
        $region43: #{tpu_custom_call.1} parent=31 // pred_region
          %249 = dma.done %s241, 64
        $region44: #{tpu_custom_call.1} parent=31 // pred_fallthru
          _
        %250 = sfence
        %p251 = pneg %p51
        %p252 = pneg %p48
        %p253 = pneg %p77
        %p254 = pneg %p74
        %s255 = sand.u32 %s92, 1
        %s256 = scalar_lea.sflag [#allocation11], %s255
        %s257 = sand.u32 %s92, 1
        %s258 = smul.addr %s257, 4
        %s259 = scalar_lea.vmem [#allocation10], %s258
        %p260 = pneg %p105
        %p261 = pneg %p102
        %p262 = pneg %p131
        %p263 = pneg %p128
        %p264 = pneg %p157
        %p265 = pneg %p154
        %p266 = scmp.eq.s32.totalorder %s28, 0
        // Predicated region
        $region45: #{tpu_custom_call.1} parent=31 // pred_check
          %p267 = pneg %p266
        $region46: #{tpu_custom_call.1} parent=31 // pred_check_branch
          %269 = sbr.rel (%p267) target = $region48
        $region47: #{tpu_custom_call.1} parent=31 // pred_region
          %270 = vst [vmem:[#allocation12] sm:$0x3] 0.0
          %v271 = vld [vmem:[#allocation9] sm:$0xf]
          %v272 = vmax.f32 %v271, 0.0
          %v273 = vmin.f32 %v272, 10.0
          %274 = vst [vmem:[#allocation2] sm:$0xf] %v273
          %vm275 = vcmp.gt.f32.partialorder %v273, 0.0001
          %v276 = vsel %vm275, 1, 0
          %v277 = vcvt.s32.f32 %v276
          %v278 = vlaneseq
          %v279 = vand.u32 %v278, 127
          %v280 = vadd.s32 %v279, 128
          %vm281 = vcmp.lt.s32.totalorder %v279, 0
          %v282 = vsub.s32 0, %v279
          %v283 = vsel %vm281, %v282, %v279
          %v284 = vshrl.u32 %v283, 4
          %v285 = vand.u32 %v283, 15
          %v286 = vsub.s32 0, %v285
          %v287 = vsel %vm281, %v286, %v285
          %vm288 = vcmp.lt.s32.totalorder %v280, 0
          %v289 = vsub.s32 0, %v280
          %v290 = vsel %vm288, %v289, %v280
          %v291 = vshrl.u32 %v290, 4
          %v292 = vand.u32 %v290, 15
          %v293 = vsub.s32 0, %v292
          %v294 = vsel %vm288, %v293, %v292
          %vm295 = vcmp.ne.s32.totalorder %v287, 0
          %vm296 = vcmp.ne.s32.totalorder %v294, 0
          %vm297 = vcmp.lt.s32.totalorder %v287, 0
          %vm298 = vcmp.lt.s32.totalorder %v294, 0
          %vm299 = vmand %vm297, %vm295
          %vm300 = vmand %vm298, %vm296
          %v301 = vadd.s32 %v287, 16
          %v302 = vadd.s32 %v294, 16
          %v303 = vsel %vm299, %v301, %v287
          %v304 = vsel %vm300, %v302, %v294
          %vm305 = vcmp.ne.s32.totalorder %v303, 0
          %vm306 = vcmp.ne.s32.totalorder %v304, 0
          %v307 = vsel %vm305, 1, 0
          %v308 = vsel %vm306, 1, 0
          %v309 = vcvt.s32.f32 %v307
          %v310 = vcvt.s32.f32 %v308
          %vm311 = vcmp.lt.s32.totalorder %v279, 0
          %v312 = vsub.s32 0, %v279
          %v313 = vsel %vm311, %v312, %v279
          %v314 = vshrl.u32 %v313, 8
          %v315 = vand.u32 %v313, 255
          %v316 = vsub.s32 0, %v315
          %v317 = vsel %vm311, %v316, %v315
          %vm318 = vcmp.lt.s32.totalorder %v280, 0
          %v319 = vsub.s32 0, %v280
          %v320 = vsel %vm318, %v319, %v280
          %v321 = vshrl.u32 %v320, 8
          %v322 = vand.u32 %v320, 255
          %v323 = vsub.s32 0, %v322
          %v324 = vsel %vm318, %v323, %v322
          %vm325 = vcmp.ne.s32.totalorder %v317, 0
          %vm326 = vcmp.ne.s32.totalorder %v324, 0
          %vm327 = vcmp.lt.s32.totalorder %v317, 0
          %vm328 = vcmp.lt.s32.totalorder %v324, 0
          %vm329 = vmand %vm327, %vm325
          %vm330 = vmand %vm328, %vm326
          %v331 = vadd.s32 %v317, 256
          %v332 = vadd.s32 %v324, 256
          %v333 = vsel %vm329, %v331, %v317
          %v334 = vsel %vm330, %v332, %v324
          %vm335 = vcmp.ge.s32.totalorder %v333, 16
          %vm336 = vcmp.ge.s32.totalorder %v334, 16
          %v337 = vsel %vm335, 1, 0
          %v338 = vsel %vm336, 1, 0
          %v339 = vcvt.s32.f32 %v337
          %v340 = vcvt.s32.f32 %v338
          %342 = vst [vmem:[#allocation1] ss:$4 sm:$0xff] %v277
          %v343 = vld.sshfl [vmem:[#allocation1] sm:$0xff pattern:$0x73625140]
          %v344 = vld.sshfl [vmem:[#allocation1 + $0x8] sm:$0xff pattern:$0x73625140]
          %347 = vrot.lane.b32.xlu0 %v343, 1
          %v348 = vpop.permute.xlu0 %347
          %349 = vrot.lane.b32.xlu0 %v344, 1
          %v350 = vpop.permute.xlu0 %349
          %vm351 = vcmp.lt.s32.totalorder %v279, 1
          %v352 = vsel %vm351, %v348, %v350
          %v353 = vsel %vm351, %v350, %v348
          %v356 = vrot.slane %v352, 6
          %vm357 = vcmask 1041408
          %v358 = vsel %vm357, %v353, %v356
          %v360 = vmul.f32 %v277, %v358
          %v363 = vrot.slane %v310, 6
          %v364 = vsel %vm357, %v309, %v363
          %v366 = vmul.f32 %v360, %v364
          %367 = vst [vmem:[#allocation1] ss:$4 sm:$0xff] %v277
          %v368 = vld.sshfl [vmem:[#allocation1] sm:$0xff pattern:$0x73625140]
          %v369 = vld.sshfl [vmem:[#allocation1 + $0x8] sm:$0xff pattern:$0x73625140]
          %372 = vrot.lane.b32.xlu0 %v368, 16
          %v373 = vpop.permute.xlu0 %372
          %374 = vrot.lane.b32.xlu0 %v369, 16
          %v375 = vpop.permute.xlu0 %374
          %vm376 = vcmp.lt.s32.totalorder %v279, 16
          %v377 = vsel %vm376, %v373, %v375
          %v378 = vsel %vm376, %v375, %v373
          %v381 = vrot.slane %v377, 6
          %v382 = vsel %vm357, %v378, %v381
          %v384 = vmul.f32 %v277, %v382
          %v387 = vrot.slane %v340, 6
          %v388 = vsel %vm357, %v339, %v387
          %v390 = vmul.f32 %v384, %v388
          %392 = vst [vmem:[#allocation1] ss:$4 sm:$0xff] %v366
          %v393 = vld.sshfl [vmem:[#allocation1] sm:$0xff pattern:$0x73625140]
          %v394 = vld.sshfl [vmem:[#allocation1 + $0x8] sm:$0xff pattern:$0x73625140]
          %v397 = vpack.c.bf16 %v394, %v393
          %v399 = vrot.slane %v397, 3
          %vm400 = vcmask 1040384
          %v403 = vsel %vm400, %v397, %v399
          %405 = vst [vmem:[#allocation3] sm:$0x3] %v403
          %407 = vst [vmem:[#allocation1] ss:$4 sm:$0xff] %v390
          %v408 = vld.sshfl [vmem:[#allocation1] sm:$0xff pattern:$0x73625140]
          %v409 = vld.sshfl [vmem:[#allocation1 + $0x8] sm:$0xff pattern:$0x73625140]
          %v412 = vpack.c.bf16 %v409, %v408
          %v414 = vrot.slane %v412, 3
          %v417 = vsel %vm400, %v412, %v414
          %419 = vst [vmem:[#allocation4] sm:$0x3] %v417
          %v420 = vadd.f32 %v366, %v390
          %422 = vst [vmem:[#allocation1] ss:$4 sm:$0xff] %v420
          %v423 = vld.sshfl [vmem:[#allocation1] sm:$0xff pattern:$0x73625140]
          %v424 = vld.sshfl [vmem:[#allocation1 + $0x8] sm:$0xff pattern:$0x73625140]
          %v427 = vsel %vm357, %v423, 0.0
          %v428 = vsel %vm357, %v424, 0.0
          %v429 = vadd.f32 %v427, %v428
          %430 = vadd.xlane.f32.xlu0 %v429
          %v431 = vpop.xlane.xlu0 %430
          %432 = vst [vmem:[#allocation13] sm:$0x3] %v431
        $region48: #{tpu_custom_call.1} parent=31 // pred_fallthru
          _
        %v433 = vld [vmem:[%s244] sm:$0xf]
        %v434 = vmax.f32 %v433, 0.0
        %v435 = vmin.f32 %v434, 10.0
        %v436 = vld [vmem:[#allocation2] sm:$0xf]
        %v437 = vsub.f32 %v435, %v436
        %439 = vst [vmem:[#allocation1] ss:$4 sm:$0xff] %v437
        %v440 = vld.sshfl [vmem:[#allocation1] sm:$0xff pattern:$0x73625140]
        %v441 = vld.sshfl [vmem:[#allocation1 + $0x8] sm:$0xff pattern:$0x73625140]
        %444 = vrot.lane.b32.xlu0 %v440, 1
        %v445 = vpop.permute.xlu0 %444
        %446 = vrot.lane.b32.xlu0 %v441, 1
        %v447 = vpop.permute.xlu0 %446
        %v448 = vlaneseq
        %v449 = vand.u32 %v448, 127
        %vm450 = vcmp.lt.s32.totalorder %v449, 1
        %v451 = vsel %vm450, %v445, %v447
        %v452 = vsel %vm450, %v447, %v445
        %v455 = vrot.slane %v451, 6
        %vm456 = vcmask 1041408
        %v457 = vsel %vm456, %v452, %v455
        %v459 = vsub.f32 %v437, %v457
        %v460 = vand.u32 2147483647, %v459
        %461 = vst [vmem:[#allocation1] ss:$4 sm:$0xff] %v437
        %v462 = vld.sshfl [vmem:[#allocation1] sm:$0xff pattern:$0x73625140]
        %v463 = vld.sshfl [vmem:[#allocation1 + $0x8] sm:$0xff pattern:$0x73625140]
        %466 = vrot.lane.b32.xlu0 %v462, 16
        %v467 = vpop.permute.xlu0 %466
        %468 = vrot.lane.b32.xlu0 %v463, 16
        %v469 = vpop.permute.xlu0 %468
        %vm470 = vcmp.lt.s32.totalorder %v449, 16
        %v471 = vsel %vm470, %v467, %v469
        %v472 = vsel %vm470, %v469, %v467
        %v475 = vrot.slane %v471, 6
        %v476 = vsel %vm456, %v472, %v475
        %v478 = vsub.f32 %v437, %v476
        %v479 = vand.u32 2147483647, %v478
        %v480 = vld [vmem:[#allocation3] sm:$0x3]
        %v481 = vunpack.c.l.bf16 %v480
        %v482 = vmul.f32 %v481, %v460
        %v483 = vld [vmem:[#allocation4] sm:$0x3]
        %v484 = vunpack.c.l.bf16 %v483
        %v485 = vmul.f32 %v484, %v479
        %vm486 = vcmp.ne.f32.partialorder %v482, %v482
        %v487 = vsel %vm486, 0.0, %v482
        %vm488 = vcmp.ne.f32.partialorder %v485, %v485
        %v489 = vsel %vm488, 0.0, %v485
        %v490 = vadd.f32 %v487, %v489
        %492 = vst [vmem:[#allocation1] ss:$4 sm:$0xff] %v490
        %v493 = vld.sshfl [vmem:[#allocation1] sm:$0xff pattern:$0x73625140]
        %v494 = vld.sshfl [vmem:[#allocation1 + $0x8] sm:$0xff pattern:$0x73625140]
        %v497 = vsel %vm456, %v493, 0.0
        %v498 = vsel %vm456, %v494, 0.0
        %v499 = vadd.f32 %v497, %v498
        %500 = vadd.xlane.f32.xlu0 %v499
        %v501 = vpop.xlane.xlu0 %500
        %v502 = vld [vmem:[#allocation12] sm:$0x3]
        %s503 = sld [smem:[#allocation5 + %s28]]
        %v504 = vstv %s503
        %v505 = vmul.f32 %v504, %v501
        %v506 = vadd.f32 %v502, %v505
        %507 = vst [vmem:[#allocation12] sm:$0x3] %v506
        // Predicated region
        $region49: #{tpu_custom_call.1} parent=31 // pred_check
          %p508 = pneg %p128
        $region50: #{tpu_custom_call.1} parent=31 // pred_check_branch
          %510 = sbr.rel (%p508) target = $region52
        $region51: #{tpu_custom_call.1} parent=31 // pred_region
          %512 = vsyncadd [#allocation7], 0
          %s513 = smul.addr %s27, 2
          %s514 = scalar_lea.hbm %s3, %s513
          %s516 = sshll.u32 [#allocation12], 4
          %s517 = int_to_ptr.vmem [resolvable:$true] %s516
          %s518 = sshll.u32 %s514, 4
          %s519 = int_to_ptr.hbm [resolvable:$true] %s518
          %521 = dma.vmem_to_hbm [thread:$0]  %s517, 32, %s519, [#allocation7]
        $region52: #{tpu_custom_call.1} parent=31 // pred_fallthru
          _
        // Predicated region
        $region53: #{tpu_custom_call.1} parent=31 // pred_check
          %p522 = pneg %p154
        $region54: #{tpu_custom_call.1} parent=31 // pred_check_branch
          %524 = sbr.rel (%p522) target = $region56
        $region55: #{tpu_custom_call.1} parent=31 // pred_region
          %526 = vsyncadd [#allocation14], 0
          %s527 = smul.addr %s27, 2
          %s528 = scalar_lea.hbm %s4, %s527
          %s530 = sshll.u32 [#allocation13], 4
          %s531 = int_to_ptr.vmem [resolvable:$true] %s530
          %s532 = sshll.u32 %s528, 4
          %s533 = int_to_ptr.hbm [resolvable:$true] %s532
          %535 = dma.vmem_to_hbm [thread:$0]  %s531, 32, %s533, [#allocation14]
        $region56: #{tpu_custom_call.1} parent=31 // pred_fallthru
          _
        // Predicated region
        $region57: #{tpu_custom_call.1} parent=31 // pred_check
          %p536 = pneg %p128
        $region58: #{tpu_custom_call.1} parent=31 // pred_check_branch
          %538 = sbr.rel (%p536) target = $region60
        $region59: #{tpu_custom_call.1} parent=31 // pred_region
          %540 = dma.done [#allocation7], 32
        $region60: #{tpu_custom_call.1} parent=31 // pred_fallthru
          _
        // Predicated region
        $region61: #{tpu_custom_call.1} parent=31 // pred_check
          %p541 = pneg %p154
        $region62: #{tpu_custom_call.1} parent=31 // pred_check_branch
          %543 = sbr.rel (%p541) target = $region64
        $region63: #{tpu_custom_call.1} parent=31 // pred_region
          %545 = dma.done [#allocation14], 32
        $region64: #{tpu_custom_call.1} parent=31 // pred_fallthru
          _
      $region32: #{tpu_custom_call.1} parent=5 // pred_fallthru
        _
      %p546 = scmp.le.s32.totalorder 2, %s18
      // Predicated region
      $region65: #{tpu_custom_call.1} parent=5 // pred_check
        %p547 = pneg %p546
      $region66: #{tpu_custom_call.1} parent=5 // pred_check_branch
        %549 = sbr.rel (%p547) target = $region68
      $region67: #{tpu_custom_call.1} parent=5 // pred_region
        %s550 = ssub.s32 %s18, 2
      $region68: #{tpu_custom_call.1} parent=5 // pred_fallthru
        _
    $region6: #{tpu_custom_call.1} parent=1 // loop_footer
      %s22 = sadd.s32 1, %s18
    $region7: #{tpu_custom_call.1} parent=1 // loop_footer_branch
      %17 = sbr.rel target = $region3
    $region8: #{tpu_custom_call.1} parent=1 // loop_exit
      _
    %551 = vsyncpa [#allocation6], 1
    %s552 = scalar_lea.sflag [#allocation6], 1
    %553 = vsyncpa %s552, 1
    %554 = vsyncpa [#allocation11], 1
    %s555 = scalar_lea.sflag [#allocation11], 1
    %556 = vsyncpa %s555, 1
    %557 = vsyncpa [#allocation7], 1
    %s558 = scalar_lea.sflag [#allocation7], 1
    %559 = vsyncpa %s558, 1
    %560 = vsyncpa [#allocation14], 1
    %561 = vsyncpa [#allocation8], 1
    %s562 = scalar_lea.sflag [#allocation8], 1
    %563 = vsyncpa %s562, 1

</llo_original>
